<compile_context>
chip_gen: v7x
topology: tpu7x:2x2x1
jax: 0.10.0
libtpu: 0.0.40
codegen_flags: <defaults>
</compile_context>

<pallas_src>
import math
import functools

import jax
import jax.numpy as jnp
from jax import lax
from jax.experimental import pallas as pl
from jax.experimental.pallas import tpu as pltpu


def _embed_gather_kernel(ids_ref, lut_hbm, out_ref, gathered, sems, *,
                         tokens_per_block, vocab, scale, unroll):
    """One grid step = one block of `tokens_per_block` tokens.

    ids_ref:   SMEM (n_pad,) int32      -- scalar-prefetched flat token ids
    lut_hbm:   HBM  (vocab, d_model)    -- embedding table, gathered via DMA
    out_ref:   VMEM (T, d_model)        -- output tile for this token block
    gathered:  VMEM (2, T, d_model)     -- double-buffered gathered rows
    sems:      DMA sems (2,)            -- one shared semaphore per buffer slot
    """
    T = tokens_per_block
    i = pl.program_id(0)
    nblocks = pl.num_programs(0)

    def issue_block(block_idx, slot):
        base = block_idx * T

        def issue(t, carry):
            idx = jnp.clip(ids_ref[base + t], 0, vocab - 1)   # OOB-id guard
            pltpu.make_async_copy(
                lut_hbm.at[pl.ds(idx, 1)],
                gathered.at[slot, pl.ds(t, 1)],
                sems.at[slot],
            ).start()
            return carry

        lax.fori_loop(0, T, issue, 0, unroll=unroll)

    # Prime the pipeline: block 0's gather is only issued on the first step.
    @pl.when(i == 0)
    def _():
        issue_block(0, 0)

    # Lookahead: start block i+1's gather BEFORE draining block i so the HBM
    # reads overlap this step's wait/scale/store and the BlockSpec writeback.
    @pl.when(i + 1 < nblocks)
    def _():
        issue_block(i + 1, (i + 1) % 2)

    # Drain block i (its DMAs were issued one grid step ago, or just above for
    # block 0).  The wait descriptor has an identical (1, d_model) shape/dtype
    # to the issued copies so each wait decrements exactly one row's signal.
    slot = i % 2

    def drain(t, carry):
        pltpu.make_async_copy(
            lut_hbm.at[pl.ds(0, 1)],
            gathered.at[slot, pl.ds(t, 1)],
            sems.at[slot],
        ).wait()
        return carry

    lax.fori_loop(0, T, drain, 0, unroll=unroll)

    # Single vectorized upcast + scale, full-tile (sublane/lane-aligned) store.
    out_ref[...] = (gathered[slot].astype(jnp.float32) * scale).astype(out_ref.dtype)


def embeddings_forward(x_ids, lut, d_model, *, tokens_per_block=256,
                       out_dtype=None):
    """x_ids: (B, S) integer token ids; lut: (vocab, d_model) table (f32 or bf16).

    out_dtype defaults to lut.dtype; pass jnp.bfloat16 in production to halve
    the output writeback.
    """
    B, S = x_ids.shape
    vocab, dm = lut.shape
    assert dm == d_model
    assert d_model % 128 == 0, "pad d_model to a multiple of 128 (masked vst.msk stores otherwise)"
    assert tokens_per_block % 8 == 0, "keep output tiles sublane-aligned"

    out_dtype = lut.dtype if out_dtype is None else out_dtype

    N = B * S
    # Shrink T for tiny inputs so we don't pad (and avoid the post-call slice).
    T = min(tokens_per_block, ((N + 7) // 8) * 8)
    num_blocks = pl.cdiv(N, T)
    n_pad = num_blocks * T

    flat_ids = x_ids.reshape(-1).astype(jnp.int32)
    if n_pad != N:
        # Pad with padding_idx=1 (a valid, zeroed row); sliced off afterwards.
        flat_ids = jnp.pad(flat_ids, (0, n_pad - N), constant_values=1)
    # NOTE: flat_ids lives whole in SMEM via scalar prefetch; this is what
    # enables the block i+1 lookahead.  For very long sequences (>~64K tokens)
    # switch to a per-block SMEM BlockSpec with a one-block lookahead index_map.

    scale = math.sqrt(float(d_model))
    lut_bytes = lut.dtype.itemsize
    out_bytes = jnp.dtype(out_dtype).itemsize

    out = pl.pallas_call(
        functools.partial(
            _embed_gather_kernel,
            tokens_per_block=T, vocab=vocab, scale=scale, unroll=8,
        ),
        out_shape=jax.ShapeDtypeStruct((n_pad, d_model), out_dtype),
        grid_spec=pltpu.PrefetchScalarGridSpec(
            num_scalar_prefetch=1,                       # flat_ids -> SMEM
            grid=(num_blocks,),
            in_specs=[
                pl.BlockSpec(memory_space=pl.ANY),       # LUT stays in HBM
            ],
            out_specs=pl.BlockSpec((T, d_model), lambda i, ids: (i, 0)),
            scratch_shapes=[
                pltpu.VMEM((2, T, d_model), lut.dtype),  # double-buffered rows
                pltpu.SemaphoreType.DMA((2,)),           # one shared sem per slot
            ],
        ),
        compiler_params=pltpu.CompilerParams(
            # Cross-step lookahead needs sequential grid execution on one core.
            dimension_semantics=("arbitrary",),
        ),
        cost_estimate=pl.CostEstimate(
            flops=n_pad * d_model,
            transcendentals=0,
            bytes_accessed=n_pad * d_model * (lut_bytes + out_bytes) + n_pad * 4,
        ),
    )(flat_ids, lut)

    if n_pad != N:
        out = out[:N]
    return out.reshape(B, S, d_model)


def init_embedding_table(key, vocab, d_model, padding_idx=1, dtype=jnp.float32):
    # nn.Embedding default init: N(0, 1); row `padding_idx` is zeroed.
    # TODO(synk): training-time zeroing of the padding row's gradient is not modeled.
    w = jax.random.normal(key, (vocab, d_model), dtype=jnp.float32)
    w = w.at[padding_idx].set(0.0)
    return w.astype(dtype)


if __name__ == "__main__":
    d_model = 128
    vocab = 32
    B, S = 2, 8

    key = jax.random.PRNGKey(0)
    k_lut, k_ids = jax.random.split(key)

    # Table kept in f32 to match the PyTorch module exactly.  For a purely
    # bandwidth-bound deployment pass dtype=jnp.bfloat16 (and
    # out_dtype=jnp.bfloat16): the kernel upcasts to f32 for the fused scale
    # and halves both gather and writeback traffic.
    lut = init_embedding_table(k_lut, vocab, d_model, padding_idx=1)
    x = jax.random.randint(k_ids, (B, S), minval=0, maxval=vocab, dtype=jnp.int32)
    # Make sure the padding index appears at least once to exercise the zero row.
    x = x.at[0, 0].set(1)

    # Small token block (still a multiple of 8) so the 16-token demo runs two
    # grid steps and exercises the cross-step double-buffered gather; the
    # default of 256 (512 on v7x) is the production tile size.
    out = embeddings_forward(x, lut, d_model, tokens_per_block=8)
    out = jax.block_until_ready(out)

    # Reference check in plain JAX (same semantics as the PyTorch module).
    ref = lut[x].astype(jnp.float32) * math.sqrt(float(d_model))
    assert out.shape == (B, S, d_model)
    assert jnp.allclose(out, ref, atol=1e-5, rtol=1e-5)
    assert jnp.allclose(out[0, 0], 0.0)  # padding_idx row stays zero

    print("KERNEL_OK")
</pallas_src>

<mosaic_0001>
module attributes {stable_mosaic.version = 11 : i64} {
  func.func @_embed_gather_kernel(%arg0: i32, %arg1: memref<16xi32, #tpu.memory_space<smem>>, %arg2: memref<32x128xf32, #tpu.memory_space<any>>, %arg3: memref<8x128xf32, #tpu.memory_space<vmem>>, %arg4: memref<2x8x128xf32, #tpu.memory_space<vmem>>, %arg5: memref<2x!tpu.dma_semaphore, #tpu.memory_space<semaphore_mem>>) attributes {dimension_semantics = [#tpu.dimension_semantics<arbitrary>], iteration_bounds = array<i64: 2>, scalar_prefetch = 1 : i64, scratch_operands = 2 : i64, tpu.core_type = #tpu.core_type<tc>, window_params = [{}, {transform_indices = @transform_1, window_bounds = array<i64: 8, 128>}]} {
    %c0_i32 = arith.constant 0 : i32
    %0 = arith.cmpi eq, %arg0, %c0_i32 : i32
    %1 = arith.extui %0 : i1 to i32
    %c0_i32_0 = arith.constant 0 : i32
    %2 = arith.cmpi ne, %1, %c0_i32_0 : i32
    scf.if %2 {
      %c0_i32_38 = arith.constant 0 : i32
      %c0_i32_39 = arith.constant 0 : i32
      %63 = arith.addi %c0_i32_39, %c0_i32_38 : i32
      %64 = arith.index_cast %63 : i32 to index
      %65 = memref.load %arg1[%64] : memref<16xi32, #tpu.memory_space<smem>>
      %c0_i32_40 = arith.constant 0 : i32
      %c31_i32 = arith.constant 31 : i32
      %66 = arith.maxsi %c0_i32_40, %65 : i32
      %67 = arith.minsi %c31_i32, %66 : i32
      %c0_i32_41 = arith.constant 0 : i32
      %c0_i32_42 = arith.constant 0 : i32
      %c0_i32_43 = arith.constant 0 : i32
      %68 = tpu.memref_slice %arg2[%67, %c0_i32_43] : memref<32x128xf32, #tpu.memory_space<any>> -> memref<1x128xf32, #tpu.memory_space<any>>
      %c0_i32_44 = arith.constant 0 : i32
      %69 = tpu.memref_slice %arg4[%c0_i32_41, %c0_i32_38, %c0_i32_44] : memref<2x8x128xf32, #tpu.memory_space<vmem>> -> memref<1x1x128xf32, #tpu.memory_space<vmem>>
      %70 = tpu.memref_squeeze %69 : memref<1x1x128xf32, #tpu.memory_space<vmem>> -> memref<1x128xf32, #tpu.memory_space<vmem>>
      %71 = tpu.memref_slice %arg5[%c0_i32_42] : memref<2x!tpu.dma_semaphore, #tpu.memory_space<semaphore_mem>> -> memref<1x!tpu.dma_semaphore, #tpu.memory_space<semaphore_mem>>
      %72 = tpu.memref_squeeze %71 : memref<1x!tpu.dma_semaphore, #tpu.memory_space<semaphore_mem>> -> memref<!tpu.dma_semaphore, #tpu.memory_space<semaphore_mem>>
      tpu.enqueue_dma source(%68 : memref<1x128xf32, #tpu.memory_space<any>>) target(%70 : memref<1x128xf32, #tpu.memory_space<vmem>>) target_semaphore(%72 : memref<!tpu.dma_semaphore, #tpu.memory_space<semaphore_mem>>)
      %c1_i32_45 = arith.constant 1 : i32
      %c0_i32_46 = arith.constant 0 : i32
      %73 = arith.addi %c0_i32_46, %c1_i32_45 : i32
      %74 = arith.index_cast %73 : i32 to index
      %75 = memref.load %arg1[%74] : memref<16xi32, #tpu.memory_space<smem>>
      %c0_i32_47 = arith.constant 0 : i32
      %c31_i32_48 = arith.constant 31 : i32
      %76 = arith.maxsi %c0_i32_47, %75 : i32
      %77 = arith.minsi %c31_i32_48, %76 : i32
      %c0_i32_49 = arith.constant 0 : i32
      %c0_i32_50 = arith.constant 0 : i32
      %c0_i32_51 = arith.constant 0 : i32
      %78 = tpu.memref_slice %arg2[%77, %c0_i32_51] : memref<32x128xf32, #tpu.memory_space<any>> -> memref<1x128xf32, #tpu.memory_space<any>>
      %c0_i32_52 = arith.constant 0 : i32
      %79 = tpu.memref_slice %arg4[%c0_i32_49, %c1_i32_45, %c0_i32_52] : memref<2x8x128xf32, #tpu.memory_space<vmem>> -> memref<1x1x128xf32, #tpu.memory_space<vmem>>
      %80 = tpu.memref_squeeze %79 : memref<1x1x128xf32, #tpu.memory_space<vmem>> -> memref<1x128xf32, #tpu.memory_space<vmem>>
      %81 = tpu.memref_slice %arg5[%c0_i32_50] : memref<2x!tpu.dma_semaphore, #tpu.memory_space<semaphore_mem>> -> memref<1x!tpu.dma_semaphore, #tpu.memory_space<semaphore_mem>>
      %82 = tpu.memref_squeeze %81 : memref<1x!tpu.dma_semaphore, #tpu.memory_space<semaphore_mem>> -> memref<!tpu.dma_semaphore, #tpu.memory_space<semaphore_mem>>
      tpu.enqueue_dma source(%78 : memref<1x128xf32, #tpu.memory_space<any>>) target(%80 : memref<1x128xf32, #tpu.memory_space<vmem>>) target_semaphore(%82 : memref<!tpu.dma_semaphore, #tpu.memory_space<semaphore_mem>>)
      %c2_i32_53 = arith.constant 2 : i32
      %c0_i32_54 = arith.constant 0 : i32
      %83 = arith.addi %c0_i32_54, %c2_i32_53 : i32
      %84 = arith.index_cast %83 : i32 to index
      %85 = memref.load %arg1[%84] : memref<16xi32, #tpu.memory_space<smem>>
      %c0_i32_55 = arith.constant 0 : i32
      %c31_i32_56 = arith.constant 31 : i32
      %86 = arith.maxsi %c0_i32_55, %85 : i32
      %87 = arith.minsi %c31_i32_56, %86 : i32
      %c0_i32_57 = arith.constant 0 : i32
      %c0_i32_58 = arith.constant 0 : i32
      %c0_i32_59 = arith.constant 0 : i32
      %88 = tpu.memref_slice %arg2[%87, %c0_i32_59] : memref<32x128xf32, #tpu.memory_space<any>> -> memref<1x128xf32, #tpu.memory_space<any>>
      %c0_i32_60 = arith.constant 0 : i32
      %89 = tpu.memref_slice %arg4[%c0_i32_57, %c2_i32_53, %c0_i32_60] : memref<2x8x128xf32, #tpu.memory_space<vmem>> -> memref<1x1x128xf32, #tpu.memory_space<vmem>>
      %90 = tpu.memref_squeeze %89 : memref<1x1x128xf32, #tpu.memory_space<vmem>> -> memref<1x128xf32, #tpu.memory_space<vmem>>
      %91 = tpu.memref_slice %arg5[%c0_i32_58] : memref<2x!tpu.dma_semaphore, #tpu.memory_space<semaphore_mem>> -> memref<1x!tpu.dma_semaphore, #tpu.memory_space<semaphore_mem>>
      %92 = tpu.memref_squeeze %91 : memref<1x!tpu.dma_semaphore, #tpu.memory_space<semaphore_mem>> -> memref<!tpu.dma_semaphore, #tpu.memory_space<semaphore_mem>>
      tpu.enqueue_dma source(%88 : memref<1x128xf32, #tpu.memory_space<any>>) target(%90 : memref<1x128xf32, #tpu.memory_space<vmem>>) target_semaphore(%92 : memref<!tpu.dma_semaphore, #tpu.memory_space<semaphore_mem>>)
      %c3_i32_61 = arith.constant 3 : i32
      %c0_i32_62 = arith.constant 0 : i32
      %93 = arith.addi %c0_i32_62, %c3_i32_61 : i32
      %94 = arith.index_cast %93 : i32 to index
      %95 = memref.load %arg1[%94] : memref<16xi32, #tpu.memory_space<smem>>
      %c0_i32_63 = arith.constant 0 : i32
      %c31_i32_64 = arith.constant 31 : i32
      %96 = arith.maxsi %c0_i32_63, %95 : i32
      %97 = arith.minsi %c31_i32_64, %96 : i32
      %c0_i32_65 = arith.constant 0 : i32
      %c0_i32_66 = arith.constant 0 : i32
      %c0_i32_67 = arith.constant 0 : i32
      %98 = tpu.memref_slice %arg2[%97, %c0_i32_67] : memref<32x128xf32, #tpu.memory_space<any>> -> memref<1x128xf32, #tpu.memory_space<any>>
      %c0_i32_68 = arith.constant 0 : i32
      %99 = tpu.memref_slice %arg4[%c0_i32_65, %c3_i32_61, %c0_i32_68] : memref<2x8x128xf32, #tpu.memory_space<vmem>> -> memref<1x1x128xf32, #tpu.memory_space<vmem>>
      %100 = tpu.memref_squeeze %99 : memref<1x1x128xf32, #tpu.memory_space<vmem>> -> memref<1x128xf32, #tpu.memory_space<vmem>>
      %101 = tpu.memref_slice %arg5[%c0_i32_66] : memref<2x!tpu.dma_semaphore, #tpu.memory_space<semaphore_mem>> -> memref<1x!tpu.dma_semaphore, #tpu.memory_space<semaphore_mem>>
      %102 = tpu.memref_squeeze %101 : memref<1x!tpu.dma_semaphore, #tpu.memory_space<semaphore_mem>> -> memref<!tpu.dma_semaphore, #tpu.memory_space<semaphore_mem>>
      tpu.enqueue_dma source(%98 : memref<1x128xf32, #tpu.memory_space<any>>) target(%100 : memref<1x128xf32, #tpu.memory_space<vmem>>) target_semaphore(%102 : memref<!tpu.dma_semaphore, #tpu.memory_space<semaphore_mem>>)
      %c4_i32_69 = arith.constant 4 : i32
      %c0_i32_70 = arith.constant 0 : i32
      %103 = arith.addi %c0_i32_70, %c4_i32_69 : i32
      %104 = arith.index_cast %103 : i32 to index
      %105 = memref.load %arg1[%104] : memref<16xi32, #tpu.memory_space<smem>>
      %c0_i32_71 = arith.constant 0 : i32
      %c31_i32_72 = arith.constant 31 : i32
      %106 = arith.maxsi %c0_i32_71, %105 : i32
      %107 = arith.minsi %c31_i32_72, %106 : i32
      %c0_i32_73 = arith.constant 0 : i32
      %c0_i32_74 = arith.constant 0 : i32
      %c0_i32_75 = arith.constant 0 : i32
      %108 = tpu.memref_slice %arg2[%107, %c0_i32_75] : memref<32x128xf32, #tpu.memory_space<any>> -> memref<1x128xf32, #tpu.memory_space<any>>
      %c0_i32_76 = arith.constant 0 : i32
      %109 = tpu.memref_slice %arg4[%c0_i32_73, %c4_i32_69, %c0_i32_76] : memref<2x8x128xf32, #tpu.memory_space<vmem>> -> memref<1x1x128xf32, #tpu.memory_space<vmem>>
      %110 = tpu.memref_squeeze %109 : memref<1x1x128xf32, #tpu.memory_space<vmem>> -> memref<1x128xf32, #tpu.memory_space<vmem>>
      %111 = tpu.memref_slice %arg5[%c0_i32_74] : memref<2x!tpu.dma_semaphore, #tpu.memory_space<semaphore_mem>> -> memref<1x!tpu.dma_semaphore, #tpu.memory_space<semaphore_mem>>
      %112 = tpu.memref_squeeze %111 : memref<1x!tpu.dma_semaphore, #tpu.memory_space<semaphore_mem>> -> memref<!tpu.dma_semaphore, #tpu.memory_space<semaphore_mem>>
      tpu.enqueue_dma source(%108 : memref<1x128xf32, #tpu.memory_space<any>>) target(%110 : memref<1x128xf32, #tpu.memory_space<vmem>>) target_semaphore(%112 : memref<!tpu.dma_semaphore, #tpu.memory_space<semaphore_mem>>)
      %c5_i32_77 = arith.constant 5 : i32
      %c0_i32_78 = arith.constant 0 : i32
      %113 = arith.addi %c0_i32_78, %c5_i32_77 : i32
      %114 = arith.index_cast %113 : i32 to index
      %115 = memref.load %arg1[%114] : memref<16xi32, #tpu.memory_space<smem>>
      %c0_i32_79 = arith.constant 0 : i32
      %c31_i32_80 = arith.constant 31 : i32
      %116 = arith.maxsi %c0_i32_79, %115 : i32
      %117 = arith.minsi %c31_i32_80, %116 : i32
      %c0_i32_81 = arith.constant 0 : i32
      %c0_i32_82 = arith.constant 0 : i32
      %c0_i32_83 = arith.constant 0 : i32
      %118 = tpu.memref_slice %arg2[%117, %c0_i32_83] : memref<32x128xf32, #tpu.memory_space<any>> -> memref<1x128xf32, #tpu.memory_space<any>>
      %c0_i32_84 = arith.constant 0 : i32
      %119 = tpu.memref_slice %arg4[%c0_i32_81, %c5_i32_77, %c0_i32_84] : memref<2x8x128xf32, #tpu.memory_space<vmem>> -> memref<1x1x128xf32, #tpu.memory_space<vmem>>
      %120 = tpu.memref_squeeze %119 : memref<1x1x128xf32, #tpu.memory_space<vmem>> -> memref<1x128xf32, #tpu.memory_space<vmem>>
      %121 = tpu.memref_slice %arg5[%c0_i32_82] : memref<2x!tpu.dma_semaphore, #tpu.memory_space<semaphore_mem>> -> memref<1x!tpu.dma_semaphore, #tpu.memory_space<semaphore_mem>>
      %122 = tpu.memref_squeeze %121 : memref<1x!tpu.dma_semaphore, #tpu.memory_space<semaphore_mem>> -> memref<!tpu.dma_semaphore, #tpu.memory_space<semaphore_mem>>
      tpu.enqueue_dma source(%118 : memref<1x128xf32, #tpu.memory_space<any>>) target(%120 : memref<1x128xf32, #tpu.memory_space<vmem>>) target_semaphore(%122 : memref<!tpu.dma_semaphore, #tpu.memory_space<semaphore_mem>>)
      %c6_i32_85 = arith.constant 6 : i32
      %c0_i32_86 = arith.constant 0 : i32
      %123 = arith.addi %c0_i32_86, %c6_i32_85 : i32
      %124 = arith.index_cast %123 : i32 to index
      %125 = memref.load %arg1[%124] : memref<16xi32, #tpu.memory_space<smem>>
      %c0_i32_87 = arith.constant 0 : i32
      %c31_i32_88 = arith.constant 31 : i32
      %126 = arith.maxsi %c0_i32_87, %125 : i32
      %127 = arith.minsi %c31_i32_88, %126 : i32
      %c0_i32_89 = arith.constant 0 : i32
      %c0_i32_90 = arith.constant 0 : i32
      %c0_i32_91 = arith.constant 0 : i32
      %128 = tpu.memref_slice %arg2[%127, %c0_i32_91] : memref<32x128xf32, #tpu.memory_space<any>> -> memref<1x128xf32, #tpu.memory_space<any>>
      %c0_i32_92 = arith.constant 0 : i32
      %129 = tpu.memref_slice %arg4[%c0_i32_89, %c6_i32_85, %c0_i32_92] : memref<2x8x128xf32, #tpu.memory_space<vmem>> -> memref<1x1x128xf32, #tpu.memory_space<vmem>>
      %130 = tpu.memref_squeeze %129 : memref<1x1x128xf32, #tpu.memory_space<vmem>> -> memref<1x128xf32, #tpu.memory_space<vmem>>
      %131 = tpu.memref_slice %arg5[%c0_i32_90] : memref<2x!tpu.dma_semaphore, #tpu.memory_space<semaphore_mem>> -> memref<1x!tpu.dma_semaphore, #tpu.memory_space<semaphore_mem>>
      %132 = tpu.memref_squeeze %131 : memref<1x!tpu.dma_semaphore, #tpu.memory_space<semaphore_mem>> -> memref<!tpu.dma_semaphore, #tpu.memory_space<semaphore_mem>>
      tpu.enqueue_dma source(%128 : memref<1x128xf32, #tpu.memory_space<any>>) target(%130 : memref<1x128xf32, #tpu.memory_space<vmem>>) target_semaphore(%132 : memref<!tpu.dma_semaphore, #tpu.memory_space<semaphore_mem>>)
      %c7_i32_93 = arith.constant 7 : i32
      %c0_i32_94 = arith.constant 0 : i32
      %133 = arith.addi %c0_i32_94, %c7_i32_93 : i32
      %134 = arith.index_cast %133 : i32 to index
      %135 = memref.load %arg1[%134] : memref<16xi32, #tpu.memory_space<smem>>
      %c0_i32_95 = arith.constant 0 : i32
      %c31_i32_96 = arith.constant 31 : i32
      %136 = arith.maxsi %c0_i32_95, %135 : i32
      %137 = arith.minsi %c31_i32_96, %136 : i32
      %c0_i32_97 = arith.constant 0 : i32
      %c0_i32_98 = arith.constant 0 : i32
      %c0_i32_99 = arith.constant 0 : i32
      %138 = tpu.memref_slice %arg2[%137, %c0_i32_99] : memref<32x128xf32, #tpu.memory_space<any>> -> memref<1x128xf32, #tpu.memory_space<any>>
      %c0_i32_100 = arith.constant 0 : i32
      %139 = tpu.memref_slice %arg4[%c0_i32_97, %c7_i32_93, %c0_i32_100] : memref<2x8x128xf32, #tpu.memory_space<vmem>> -> memref<1x1x128xf32, #tpu.memory_space<vmem>>
      %140 = tpu.memref_squeeze %139 : memref<1x1x128xf32, #tpu.memory_space<vmem>> -> memref<1x128xf32, #tpu.memory_space<vmem>>
      %141 = tpu.memref_slice %arg5[%c0_i32_98] : memref<2x!tpu.dma_semaphore, #tpu.memory_space<semaphore_mem>> -> memref<1x!tpu.dma_semaphore, #tpu.memory_space<semaphore_mem>>
      %142 = tpu.memref_squeeze %141 : memref<1x!tpu.dma_semaphore, #tpu.memory_space<semaphore_mem>> -> memref<!tpu.dma_semaphore, #tpu.memory_space<semaphore_mem>>
      tpu.enqueue_dma source(%138 : memref<1x128xf32, #tpu.memory_space<any>>) target(%140 : memref<1x128xf32, #tpu.memory_space<vmem>>) target_semaphore(%142 : memref<!tpu.dma_semaphore, #tpu.memory_space<semaphore_mem>>)
      %c8_i32_101 = arith.constant 8 : i32
    } else {
    }
    %c1_i32 = arith.constant 1 : i32
    %3 = arith.addi %arg0, %c1_i32 : i32
    %c2_i32 = arith.constant 2 : i32
    %4 = arith.cmpi slt, %3, %c2_i32 : i32
    %5 = arith.extui %4 : i1 to i32
    %c0_i32_1 = arith.constant 0 : i32
    %6 = arith.cmpi ne, %5, %c0_i32_1 : i32
    scf.if %6 {
      %c1_i32_38 = arith.constant 1 : i32
      %63 = arith.addi %arg0, %c1_i32_38 : i32
      %c1_i32_39 = arith.constant 1 : i32
      %64 = arith.addi %arg0, %c1_i32_39 : i32
      %c2_i32_40 = arith.constant 2 : i32
      %c0_i32_41 = arith.constant 0 : i32
      %65 = arith.cmpi eq, %c2_i32_40, %c0_i32_41 : i32
      %c1_i32_42 = arith.constant 1 : i32
      %66 = arith.select %65, %c1_i32_42, %c2_i32_40 : i32
      %67 = arith.remsi %64, %66 : i32
      %c0_i32_43 = arith.constant 0 : i32
      %68 = arith.cmpi ne, %67, %c0_i32_43 : i32
      %c0_i32_44 = arith.constant 0 : i32
      %69 = arith.cmpi slt, %67, %c0_i32_44 : i32
      %c0_i32_45 = arith.constant 0 : i32
      %70 = arith.cmpi slt, %66, %c0_i32_45 : i32
      %71 = arith.xori %69, %70 : i1
      %72 = arith.andi %71, %68 : i1
      %73 = arith.addi %67, %66 : i32
      %74 = arith.select %72, %73, %67 : i32
      %c8_i32_46 = arith.constant 8 : i32
      %75 = arith.muli %63, %c8_i32_46 : i32
      %c0_i32_47 = arith.constant 0 : i32
      %76 = arith.addi %75, %c0_i32_47 : i32
      %77 = arith.index_cast %76 : i32 to index
      %78 = memref.load %arg1[%77] : memref<16xi32, #tpu.memory_space<smem>>
      %c0_i32_48 = arith.constant 0 : i32
      %c31_i32 = arith.constant 31 : i32
      %79 = arith.maxsi %c0_i32_48, %78 : i32
      %80 = arith.minsi %c31_i32, %79 : i32
      %c0_i32_49 = arith.constant 0 : i32
      %81 = tpu.memref_slice %arg2[%80, %c0_i32_49] : memref<32x128xf32, #tpu.memory_space<any>> -> memref<1x128xf32, #tpu.memory_space<any>>
      %c0_i32_50 = arith.constant 0 : i32
      %82 = tpu.memref_slice %arg4[%74, %c0_i32_47, %c0_i32_50] : memref<2x8x128xf32, #tpu.memory_space<vmem>> -> memref<1x1x128xf32, #tpu.memory_space<vmem>>
      %83 = tpu.memref_squeeze %82 : memref<1x1x128xf32, #tpu.memory_space<vmem>> -> memref<1x128xf32, #tpu.memory_space<vmem>>
      %84 = tpu.memref_slice %arg5[%74] : memref<2x!tpu.dma_semaphore, #tpu.memory_space<semaphore_mem>> -> memref<1x!tpu.dma_semaphore, #tpu.memory_space<semaphore_mem>>
      %85 = tpu.memref_squeeze %84 : memref<1x!tpu.dma_semaphore, #tpu.memory_space<semaphore_mem>> -> memref<!tpu.dma_semaphore, #tpu.memory_space<semaphore_mem>>
      tpu.enqueue_dma source(%81 : memref<1x128xf32, #tpu.memory_space<any>>) target(%83 : memref<1x128xf32, #tpu.memory_space<vmem>>) target_semaphore(%85 : memref<!tpu.dma_semaphore, #tpu.memory_space<semaphore_mem>>)
      %c1_i32_51 = arith.constant 1 : i32
      %86 = arith.addi %75, %c1_i32_51 : i32
      %87 = arith.index_cast %86 : i32 to index
      %88 = memref.load %arg1[%87] : memref<16xi32, #tpu.memory_space<smem>>
      %c0_i32_52 = arith.constant 0 : i32
      %c31_i32_53 = arith.constant 31 : i32
      %89 = arith.maxsi %c0_i32_52, %88 : i32
      %90 = arith.minsi %c31_i32_53, %89 : i32
      %c0_i32_54 = arith.constant 0 : i32
      %91 = tpu.memref_slice %arg2[%90, %c0_i32_54] : memref<32x128xf32, #tpu.memory_space<any>> -> memref<1x128xf32, #tpu.memory_space<any>>
      %c0_i32_55 = arith.constant 0 : i32
      %92 = tpu.memref_slice %arg4[%74, %c1_i32_51, %c0_i32_55] : memref<2x8x128xf32, #tpu.memory_space<vmem>> -> memref<1x1x128xf32, #tpu.memory_space<vmem>>
      %93 = tpu.memref_squeeze %92 : memref<1x1x128xf32, #tpu.memory_space<vmem>> -> memref<1x128xf32, #tpu.memory_space<vmem>>
      %94 = tpu.memref_slice %arg5[%74] : memref<2x!tpu.dma_semaphore, #tpu.memory_space<semaphore_mem>> -> memref<1x!tpu.dma_semaphore, #tpu.memory_space<semaphore_mem>>
      %95 = tpu.memref_squeeze %94 : memref<1x!tpu.dma_semaphore, #tpu.memory_space<semaphore_mem>> -> memref<!tpu.dma_semaphore, #tpu.memory_space<semaphore_mem>>
      tpu.enqueue_dma source(%91 : memref<1x128xf32, #tpu.memory_space<any>>) target(%93 : memref<1x128xf32, #tpu.memory_space<vmem>>) target_semaphore(%95 : memref<!tpu.dma_semaphore, #tpu.memory_space<semaphore_mem>>)
      %c2_i32_56 = arith.constant 2 : i32
      %96 = arith.addi %75, %c2_i32_56 : i32
      %97 = arith.index_cast %96 : i32 to index
      %98 = memref.load %arg1[%97] : memref<16xi32, #tpu.memory_space<smem>>
      %c0_i32_57 = arith.constant 0 : i32
      %c31_i32_58 = arith.constant 31 : i32
      %99 = arith.maxsi %c0_i32_57, %98 : i32
      %100 = arith.minsi %c31_i32_58, %99 : i32
      %c0_i32_59 = arith.constant 0 : i32
      %101 = tpu.memref_slice %arg2[%100, %c0_i32_59] : memref<32x128xf32, #tpu.memory_space<any>> -> memref<1x128xf32, #tpu.memory_space<any>>
      %c0_i32_60 = arith.constant 0 : i32
      %102 = tpu.memref_slice %arg4[%74, %c2_i32_56, %c0_i32_60] : memref<2x8x128xf32, #tpu.memory_space<vmem>> -> memref<1x1x128xf32, #tpu.memory_space<vmem>>
      %103 = tpu.memref_squeeze %102 : memref<1x1x128xf32, #tpu.memory_space<vmem>> -> memref<1x128xf32, #tpu.memory_space<vmem>>
      %104 = tpu.memref_slice %arg5[%74] : memref<2x!tpu.dma_semaphore, #tpu.memory_space<semaphore_mem>> -> memref<1x!tpu.dma_semaphore, #tpu.memory_space<semaphore_mem>>
      %105 = tpu.memref_squeeze %104 : memref<1x!tpu.dma_semaphore, #tpu.memory_space<semaphore_mem>> -> memref<!tpu.dma_semaphore, #tpu.memory_space<semaphore_mem>>
      tpu.enqueue_dma source(%101 : memref<1x128xf32, #tpu.memory_space<any>>) target(%103 : memref<1x128xf32, #tpu.memory_space<vmem>>) target_semaphore(%105 : memref<!tpu.dma_semaphore, #tpu.memory_space<semaphore_mem>>)
      %c3_i32_61 = arith.constant 3 : i32
      %106 = arith.addi %75, %c3_i32_61 : i32
      %107 = arith.index_cast %106 : i32 to index
      %108 = memref.load %arg1[%107] : memref<16xi32, #tpu.memory_space<smem>>
      %c0_i32_62 = arith.constant 0 : i32
      %c31_i32_63 = arith.constant 31 : i32
      %109 = arith.maxsi %c0_i32_62, %108 : i32
      %110 = arith.minsi %c31_i32_63, %109 : i32
      %c0_i32_64 = arith.constant 0 : i32
      %111 = tpu.memref_slice %arg2[%110, %c0_i32_64] : memref<32x128xf32, #tpu.memory_space<any>> -> memref<1x128xf32, #tpu.memory_space<any>>
      %c0_i32_65 = arith.constant 0 : i32
      %112 = tpu.memref_slice %arg4[%74, %c3_i32_61, %c0_i32_65] : memref<2x8x128xf32, #tpu.memory_space<vmem>> -> memref<1x1x128xf32, #tpu.memory_space<vmem>>
      %113 = tpu.memref_squeeze %112 : memref<1x1x128xf32, #tpu.memory_space<vmem>> -> memref<1x128xf32, #tpu.memory_space<vmem>>
      %114 = tpu.memref_slice %arg5[%74] : memref<2x!tpu.dma_semaphore, #tpu.memory_space<semaphore_mem>> -> memref<1x!tpu.dma_semaphore, #tpu.memory_space<semaphore_mem>>
      %115 = tpu.memref_squeeze %114 : memref<1x!tpu.dma_semaphore, #tpu.memory_space<semaphore_mem>> -> memref<!tpu.dma_semaphore, #tpu.memory_space<semaphore_mem>>
      tpu.enqueue_dma source(%111 : memref<1x128xf32, #tpu.memory_space<any>>) target(%113 : memref<1x128xf32, #tpu.memory_space<vmem>>) target_semaphore(%115 : memref<!tpu.dma_semaphore, #tpu.memory_space<semaphore_mem>>)
      %c4_i32_66 = arith.constant 4 : i32
      %116 = arith.addi %75, %c4_i32_66 : i32
      %117 = arith.index_cast %116 : i32 to index
      %118 = memref.load %arg1[%117] : memref<16xi32, #tpu.memory_space<smem>>
      %c0_i32_67 = arith.constant 0 : i32
      %c31_i32_68 = arith.constant 31 : i32
      %119 = arith.maxsi %c0_i32_67, %118 : i32
      %120 = arith.minsi %c31_i32_68, %119 : i32
      %c0_i32_69 = arith.constant 0 : i32
      %121 = tpu.memref_slice %arg2[%120, %c0_i32_69] : memref<32x128xf32, #tpu.memory_space<any>> -> memref<1x128xf32, #tpu.memory_space<any>>
      %c0_i32_70 = arith.constant 0 : i32
      %122 = tpu.memref_slice %arg4[%74, %c4_i32_66, %c0_i32_70] : memref<2x8x128xf32, #tpu.memory_space<vmem>> -> memref<1x1x128xf32, #tpu.memory_space<vmem>>
      %123 = tpu.memref_squeeze %122 : memref<1x1x128xf32, #tpu.memory_space<vmem>> -> memref<1x128xf32, #tpu.memory_space<vmem>>
      %124 = tpu.memref_slice %arg5[%74] : memref<2x!tpu.dma_semaphore, #tpu.memory_space<semaphore_mem>> -> memref<1x!tpu.dma_semaphore, #tpu.memory_space<semaphore_mem>>
      %125 = tpu.memref_squeeze %124 : memref<1x!tpu.dma_semaphore, #tpu.memory_space<semaphore_mem>> -> memref<!tpu.dma_semaphore, #tpu.memory_space<semaphore_mem>>
      tpu.enqueue_dma source(%121 : memref<1x128xf32, #tpu.memory_space<any>>) target(%123 : memref<1x128xf32, #tpu.memory_space<vmem>>) target_semaphore(%125 : memref<!tpu.dma_semaphore, #tpu.memory_space<semaphore_mem>>)
      %c5_i32_71 = arith.constant 5 : i32
      %126 = arith.addi %75, %c5_i32_71 : i32
      %127 = arith.index_cast %126 : i32 to index
      %128 = memref.load %arg1[%127] : memref<16xi32, #tpu.memory_space<smem>>
      %c0_i32_72 = arith.constant 0 : i32
      %c31_i32_73 = arith.constant 31 : i32
      %129 = arith.maxsi %c0_i32_72, %128 : i32
      %130 = arith.minsi %c31_i32_73, %129 : i32
      %c0_i32_74 = arith.constant 0 : i32
      %131 = tpu.memref_slice %arg2[%130, %c0_i32_74] : memref<32x128xf32, #tpu.memory_space<any>> -> memref<1x128xf32, #tpu.memory_space<any>>
      %c0_i32_75 = arith.constant 0 : i32
      %132 = tpu.memref_slice %arg4[%74, %c5_i32_71, %c0_i32_75] : memref<2x8x128xf32, #tpu.memory_space<vmem>> -> memref<1x1x128xf32, #tpu.memory_space<vmem>>
      %133 = tpu.memref_squeeze %132 : memref<1x1x128xf32, #tpu.memory_space<vmem>> -> memref<1x128xf32, #tpu.memory_space<vmem>>
      %134 = tpu.memref_slice %arg5[%74] : memref<2x!tpu.dma_semaphore, #tpu.memory_space<semaphore_mem>> -> memref<1x!tpu.dma_semaphore, #tpu.memory_space<semaphore_mem>>
      %135 = tpu.memref_squeeze %134 : memref<1x!tpu.dma_semaphore, #tpu.memory_space<semaphore_mem>> -> memref<!tpu.dma_semaphore, #tpu.memory_space<semaphore_mem>>
      tpu.enqueue_dma source(%131 : memref<1x128xf32, #tpu.memory_space<any>>) target(%133 : memref<1x128xf32, #tpu.memory_space<vmem>>) target_semaphore(%135 : memref<!tpu.dma_semaphore, #tpu.memory_space<semaphore_mem>>)
      %c6_i32_76 = arith.constant 6 : i32
      %136 = arith.addi %75, %c6_i32_76 : i32
      %137 = arith.index_cast %136 : i32 to index
      %138 = memref.load %arg1[%137] : memref<16xi32, #tpu.memory_space<smem>>
      %c0_i32_77 = arith.constant 0 : i32
      %c31_i32_78 = arith.constant 31 : i32
      %139 = arith.maxsi %c0_i32_77, %138 : i32
      %140 = arith.minsi %c31_i32_78, %139 : i32
      %c0_i32_79 = arith.constant 0 : i32
      %141 = tpu.memref_slice %arg2[%140, %c0_i32_79] : memref<32x128xf32, #tpu.memory_space<any>> -> memref<1x128xf32, #tpu.memory_space<any>>
      %c0_i32_80 = arith.constant 0 : i32
      %142 = tpu.memref_slice %arg4[%74, %c6_i32_76, %c0_i32_80] : memref<2x8x128xf32, #tpu.memory_space<vmem>> -> memref<1x1x128xf32, #tpu.memory_space<vmem>>
      %143 = tpu.memref_squeeze %142 : memref<1x1x128xf32, #tpu.memory_space<vmem>> -> memref<1x128xf32, #tpu.memory_space<vmem>>
      %144 = tpu.memref_slice %arg5[%74] : memref<2x!tpu.dma_semaphore, #tpu.memory_space<semaphore_mem>> -> memref<1x!tpu.dma_semaphore, #tpu.memory_space<semaphore_mem>>
      %145 = tpu.memref_squeeze %144 : memref<1x!tpu.dma_semaphore, #tpu.memory_space<semaphore_mem>> -> memref<!tpu.dma_semaphore, #tpu.memory_space<semaphore_mem>>
      tpu.enqueue_dma source(%141 : memref<1x128xf32, #tpu.memory_space<any>>) target(%143 : memref<1x128xf32, #tpu.memory_space<vmem>>) target_semaphore(%145 : memref<!tpu.dma_semaphore, #tpu.memory_space<semaphore_mem>>)
      %c7_i32_81 = arith.constant 7 : i32
      %146 = arith.addi %75, %c7_i32_81 : i32
      %147 = arith.index_cast %146 : i32 to index
      %148 = memref.load %arg1[%147] : memref<16xi32, #tpu.memory_space<smem>>
      %c0_i32_82 = arith.constant 0 : i32
      %c31_i32_83 = arith.constant 31 : i32
      %149 = arith.maxsi %c0_i32_82, %148 : i32
      %150 = arith.minsi %c31_i32_83, %149 : i32
      %c0_i32_84 = arith.constant 0 : i32
      %151 = tpu.memref_slice %arg2[%150, %c0_i32_84] : memref<32x128xf32, #tpu.memory_space<any>> -> memref<1x128xf32, #tpu.memory_space<any>>
      %c0_i32_85 = arith.constant 0 : i32
      %152 = tpu.memref_slice %arg4[%74, %c7_i32_81, %c0_i32_85] : memref<2x8x128xf32, #tpu.memory_space<vmem>> -> memref<1x1x128xf32, #tpu.memory_space<vmem>>
      %153 = tpu.memref_squeeze %152 : memref<1x1x128xf32, #tpu.memory_space<vmem>> -> memref<1x128xf32, #tpu.memory_space<vmem>>
      %154 = tpu.memref_slice %arg5[%74] : memref<2x!tpu.dma_semaphore, #tpu.memory_space<semaphore_mem>> -> memref<1x!tpu.dma_semaphore, #tpu.memory_space<semaphore_mem>>
      %155 = tpu.memref_squeeze %154 : memref<1x!tpu.dma_semaphore, #tpu.memory_space<semaphore_mem>> -> memref<!tpu.dma_semaphore, #tpu.memory_space<semaphore_mem>>
      tpu.enqueue_dma source(%151 : memref<1x128xf32, #tpu.memory_space<any>>) target(%153 : memref<1x128xf32, #tpu.memory_space<vmem>>) target_semaphore(%155 : memref<!tpu.dma_semaphore, #tpu.memory_space<semaphore_mem>>)
      %c8_i32_86 = arith.constant 8 : i32
    } else {
    }
    %c2_i32_2 = arith.constant 2 : i32
    %c0_i32_3 = arith.constant 0 : i32
    %7 = arith.cmpi eq, %c2_i32_2, %c0_i32_3 : i32
    %c1_i32_4 = arith.constant 1 : i32
    %8 = arith.select %7, %c1_i32_4, %c2_i32_2 : i32
    %9 = arith.remsi %arg0, %8 : i32
    %c0_i32_5 = arith.constant 0 : i32
    %10 = arith.cmpi ne, %9, %c0_i32_5 : i32
    %c0_i32_6 = arith.constant 0 : i32
    %11 = arith.cmpi slt, %9, %c0_i32_6 : i32
    %c0_i32_7 = arith.constant 0 : i32
    %12 = arith.cmpi slt, %8, %c0_i32_7 : i32
    %13 = arith.xori %11, %12 : i1
    %14 = arith.andi %13, %10 : i1
    %15 = arith.addi %9, %8 : i32
    %16 = arith.select %14, %15, %9 : i32
    %c0_i32_8 = arith.constant 0 : i32
    %c0_i32_9 = arith.constant 0 : i32
    %c0_i32_10 = arith.constant 0 : i32
    %17 = tpu.memref_slice %arg2[%c0_i32_9, %c0_i32_10] : memref<32x128xf32, #tpu.memory_space<any>> -> memref<1x128xf32, #tpu.memory_space<any>>
    %c0_i32_11 = arith.constant 0 : i32
    %18 = tpu.memref_slice %arg4[%16, %c0_i32_8, %c0_i32_11] : memref<2x8x128xf32, #tpu.memory_space<vmem>> -> memref<1x1x128xf32, #tpu.memory_space<vmem>>
    %19 = tpu.memref_squeeze %18 : memref<1x1x128xf32, #tpu.memory_space<vmem>> -> memref<1x128xf32, #tpu.memory_space<vmem>>
    %20 = tpu.memref_slice %arg5[%16] : memref<2x!tpu.dma_semaphore, #tpu.memory_space<semaphore_mem>> -> memref<1x!tpu.dma_semaphore, #tpu.memory_space<semaphore_mem>>
    %21 = tpu.memref_squeeze %20 : memref<1x!tpu.dma_semaphore, #tpu.memory_space<semaphore_mem>> -> memref<!tpu.dma_semaphore, #tpu.memory_space<semaphore_mem>>
    tpu.wait_dma2 semaphore(%21 : memref<!tpu.dma_semaphore, #tpu.memory_space<semaphore_mem>>) src(%17 : memref<1x128xf32, #tpu.memory_space<any>>) dst(%19 : memref<1x128xf32, #tpu.memory_space<vmem>>)
    %c1_i32_12 = arith.constant 1 : i32
    %c0_i32_13 = arith.constant 0 : i32
    %c0_i32_14 = arith.constant 0 : i32
    %22 = tpu.memref_slice %arg2[%c0_i32_13, %c0_i32_14] : memref<32x128xf32, #tpu.memory_space<any>> -> memref<1x128xf32, #tpu.memory_space<any>>
    %c0_i32_15 = arith.constant 0 : i32
    %23 = tpu.memref_slice %arg4[%16, %c1_i32_12, %c0_i32_15] : memref<2x8x128xf32, #tpu.memory_space<vmem>> -> memref<1x1x128xf32, #tpu.memory_space<vmem>>
    %24 = tpu.memref_squeeze %23 : memref<1x1x128xf32, #tpu.memory_space<vmem>> -> memref<1x128xf32, #tpu.memory_space<vmem>>
    %25 = tpu.memref_slice %arg5[%16] : memref<2x!tpu.dma_semaphore, #tpu.memory_space<semaphore_mem>> -> memref<1x!tpu.dma_semaphore, #tpu.memory_space<semaphore_mem>>
    %26 = tpu.memref_squeeze %25 : memref<1x!tpu.dma_semaphore, #tpu.memory_space<semaphore_mem>> -> memref<!tpu.dma_semaphore, #tpu.memory_space<semaphore_mem>>
    tpu.wait_dma2 semaphore(%26 : memref<!tpu.dma_semaphore, #tpu.memory_space<semaphore_mem>>) src(%22 : memref<1x128xf32, #tpu.memory_space<any>>) dst(%24 : memref<1x128xf32, #tpu.memory_space<vmem>>)
    %c2_i32_16 = arith.constant 2 : i32
    %c0_i32_17 = arith.constant 0 : i32
    %c0_i32_18 = arith.constant 0 : i32
    %27 = tpu.memref_slice %arg2[%c0_i32_17, %c0_i32_18] : memref<32x128xf32, #tpu.memory_space<any>> -> memref<1x128xf32, #tpu.memory_space<any>>
    %c0_i32_19 = arith.constant 0 : i32
    %28 = tpu.memref_slice %arg4[%16, %c2_i32_16, %c0_i32_19] : memref<2x8x128xf32, #tpu.memory_space<vmem>> -> memref<1x1x128xf32, #tpu.memory_space<vmem>>
    %29 = tpu.memref_squeeze %28 : memref<1x1x128xf32, #tpu.memory_space<vmem>> -> memref<1x128xf32, #tpu.memory_space<vmem>>
    %30 = tpu.memref_slice %arg5[%16] : memref<2x!tpu.dma_semaphore, #tpu.memory_space<semaphore_mem>> -> memref<1x!tpu.dma_semaphore, #tpu.memory_space<semaphore_mem>>
    %31 = tpu.memref_squeeze %30 : memref<1x!tpu.dma_semaphore, #tpu.memory_space<semaphore_mem>> -> memref<!tpu.dma_semaphore, #tpu.memory_space<semaphore_mem>>
    tpu.wait_dma2 semaphore(%31 : memref<!tpu.dma_semaphore, #tpu.memory_space<semaphore_mem>>) src(%27 : memref<1x128xf32, #tpu.memory_space<any>>) dst(%29 : memref<1x128xf32, #tpu.memory_space<vmem>>)
    %c3_i32 = arith.constant 3 : i32
    %c0_i32_20 = arith.constant 0 : i32
    %c0_i32_21 = arith.constant 0 : i32
    %32 = tpu.memref_slice %arg2[%c0_i32_20, %c0_i32_21] : memref<32x128xf32, #tpu.memory_space<any>> -> memref<1x128xf32, #tpu.memory_space<any>>
    %c0_i32_22 = arith.constant 0 : i32
    %33 = tpu.memref_slice %arg4[%16, %c3_i32, %c0_i32_22] : memref<2x8x128xf32, #tpu.memory_space<vmem>> -> memref<1x1x128xf32, #tpu.memory_space<vmem>>
    %34 = tpu.memref_squeeze %33 : memref<1x1x128xf32, #tpu.memory_space<vmem>> -> memref<1x128xf32, #tpu.memory_space<vmem>>
    %35 = tpu.memref_slice %arg5[%16] : memref<2x!tpu.dma_semaphore, #tpu.memory_space<semaphore_mem>> -> memref<1x!tpu.dma_semaphore, #tpu.memory_space<semaphore_mem>>
    %36 = tpu.memref_squeeze %35 : memref<1x!tpu.dma_semaphore, #tpu.memory_space<semaphore_mem>> -> memref<!tpu.dma_semaphore, #tpu.memory_space<semaphore_mem>>
    tpu.wait_dma2 semaphore(%36 : memref<!tpu.dma_semaphore, #tpu.memory_space<semaphore_mem>>) src(%32 : memref<1x128xf32, #tpu.memory_space<any>>) dst(%34 : memref<1x128xf32, #tpu.memory_space<vmem>>)
    %c4_i32 = arith.constant 4 : i32
    %c0_i32_23 = arith.constant 0 : i32
    %c0_i32_24 = arith.constant 0 : i32
    %37 = tpu.memref_slice %arg2[%c0_i32_23, %c0_i32_24] : memref<32x128xf32, #tpu.memory_space<any>> -> memref<1x128xf32, #tpu.memory_space<any>>
    %c0_i32_25 = arith.constant 0 : i32
    %38 = tpu.memref_slice %arg4[%16, %c4_i32, %c0_i32_25] : memref<2x8x128xf32, #tpu.memory_space<vmem>> -> memref<1x1x128xf32, #tpu.memory_space<vmem>>
    %39 = tpu.memref_squeeze %38 : memref<1x1x128xf32, #tpu.memory_space<vmem>> -> memref<1x128xf32, #tpu.memory_space<vmem>>
    %40 = tpu.memref_slice %arg5[%16] : memref<2x!tpu.dma_semaphore, #tpu.memory_space<semaphore_mem>> -> memref<1x!tpu.dma_semaphore, #tpu.memory_space<semaphore_mem>>
    %41 = tpu.memref_squeeze %40 : memref<1x!tpu.dma_semaphore, #tpu.memory_space<semaphore_mem>> -> memref<!tpu.dma_semaphore, #tpu.memory_space<semaphore_mem>>
    tpu.wait_dma2 semaphore(%41 : memref<!tpu.dma_semaphore, #tpu.memory_space<semaphore_mem>>) src(%37 : memref<1x128xf32, #tpu.memory_space<any>>) dst(%39 : memref<1x128xf32, #tpu.memory_space<vmem>>)
    %c5_i32 = arith.constant 5 : i32
    %c0_i32_26 = arith.constant 0 : i32
    %c0_i32_27 = arith.constant 0 : i32
    %42 = tpu.memref_slice %arg2[%c0_i32_26, %c0_i32_27] : memref<32x128xf32, #tpu.memory_space<any>> -> memref<1x128xf32, #tpu.memory_space<any>>
    %c0_i32_28 = arith.constant 0 : i32
    %43 = tpu.memref_slice %arg4[%16, %c5_i32, %c0_i32_28] : memref<2x8x128xf32, #tpu.memory_space<vmem>> -> memref<1x1x128xf32, #tpu.memory_space<vmem>>
    %44 = tpu.memref_squeeze %43 : memref<1x1x128xf32, #tpu.memory_space<vmem>> -> memref<1x128xf32, #tpu.memory_space<vmem>>
    %45 = tpu.memref_slice %arg5[%16] : memref<2x!tpu.dma_semaphore, #tpu.memory_space<semaphore_mem>> -> memref<1x!tpu.dma_semaphore, #tpu.memory_space<semaphore_mem>>
    %46 = tpu.memref_squeeze %45 : memref<1x!tpu.dma_semaphore, #tpu.memory_space<semaphore_mem>> -> memref<!tpu.dma_semaphore, #tpu.memory_space<semaphore_mem>>
    tpu.wait_dma2 semaphore(%46 : memref<!tpu.dma_semaphore, #tpu.memory_space<semaphore_mem>>) src(%42 : memref<1x128xf32, #tpu.memory_space<any>>) dst(%44 : memref<1x128xf32, #tpu.memory_space<vmem>>)
    %c6_i32 = arith.constant 6 : i32
    %c0_i32_29 = arith.constant 0 : i32
    %c0_i32_30 = arith.constant 0 : i32
    %47 = tpu.memref_slice %arg2[%c0_i32_29, %c0_i32_30] : memref<32x128xf32, #tpu.memory_space<any>> -> memref<1x128xf32, #tpu.memory_space<any>>
    %c0_i32_31 = arith.constant 0 : i32
    %48 = tpu.memref_slice %arg4[%16, %c6_i32, %c0_i32_31] : memref<2x8x128xf32, #tpu.memory_space<vmem>> -> memref<1x1x128xf32, #tpu.memory_space<vmem>>
    %49 = tpu.memref_squeeze %48 : memref<1x1x128xf32, #tpu.memory_space<vmem>> -> memref<1x128xf32, #tpu.memory_space<vmem>>
    %50 = tpu.memref_slice %arg5[%16] : memref<2x!tpu.dma_semaphore, #tpu.memory_space<semaphore_mem>> -> memref<1x!tpu.dma_semaphore, #tpu.memory_space<semaphore_mem>>
    %51 = tpu.memref_squeeze %50 : memref<1x!tpu.dma_semaphore, #tpu.memory_space<semaphore_mem>> -> memref<!tpu.dma_semaphore, #tpu.memory_space<semaphore_mem>>
    tpu.wait_dma2 semaphore(%51 : memref<!tpu.dma_semaphore, #tpu.memory_space<semaphore_mem>>) src(%47 : memref<1x128xf32, #tpu.memory_space<any>>) dst(%49 : memref<1x128xf32, #tpu.memory_space<vmem>>)
    %c7_i32 = arith.constant 7 : i32
    %c0_i32_32 = arith.constant 0 : i32
    %c0_i32_33 = arith.constant 0 : i32
    %52 = tpu.memref_slice %arg2[%c0_i32_32, %c0_i32_33] : memref<32x128xf32, #tpu.memory_space<any>> -> memref<1x128xf32, #tpu.memory_space<any>>
    %c0_i32_34 = arith.constant 0 : i32
    %53 = tpu.memref_slice %arg4[%16, %c7_i32, %c0_i32_34] : memref<2x8x128xf32, #tpu.memory_space<vmem>> -> memref<1x1x128xf32, #tpu.memory_space<vmem>>
    %54 = tpu.memref_squeeze %53 : memref<1x1x128xf32, #tpu.memory_space<vmem>> -> memref<1x128xf32, #tpu.memory_space<vmem>>
    %55 = tpu.memref_slice %arg5[%16] : memref<2x!tpu.dma_semaphore, #tpu.memory_space<semaphore_mem>> -> memref<1x!tpu.dma_semaphore, #tpu.memory_space<semaphore_mem>>
    %56 = tpu.memref_squeeze %55 : memref<1x!tpu.dma_semaphore, #tpu.memory_space<semaphore_mem>> -> memref<!tpu.dma_semaphore, #tpu.memory_space<semaphore_mem>>
    tpu.wait_dma2 semaphore(%56 : memref<!tpu.dma_semaphore, #tpu.memory_space<semaphore_mem>>) src(%52 : memref<1x128xf32, #tpu.memory_space<any>>) dst(%54 : memref<1x128xf32, #tpu.memory_space<vmem>>)
    %c8_i32 = arith.constant 8 : i32
    %57 = arith.index_cast %16 : i32 to index
    %c0 = arith.constant 0 : index
    %c0_35 = arith.constant 0 : index
    %58 = vector.load %arg4[%57, %c0, %c0_35] : memref<2x8x128xf32, #tpu.memory_space<vmem>>, vector<1x8x128xf32>
    %59 = vector.shape_cast %58 : vector<1x8x128xf32> to vector<8x128xf32>
    %cst = arith.constant 11.3137083 : f32
    %60 = vector.broadcast %cst : f32 to vector<8x128xf32>
    %61 = arith.mulf %59, %60 : vector<8x128xf32>
    %c0_36 = arith.constant 0 : index
    %c0_37 = arith.constant 0 : index
    %62 = vector.load %arg3[%c0_36, %c0_37] : memref<8x128xf32, #tpu.memory_space<vmem>>, vector<8x128xf32>
    tpu.vector_store %arg3[%c0_36, %c0_37], %61 {strides = array<i32>} : memref<8x128xf32, #tpu.memory_space<vmem>>, vector<8x128xf32>,
    return
  }
  func.func @transform_1(%arg0: i32, %arg1: memref<16xi32, #tpu.memory_space<smem>>) -> (i32, i32) {
    %c0_i32 = arith.constant 0 : i32
    %c0_i32_0 = arith.constant 0 : i32
    return %arg0, %c0_i32 : i32, i32
  }
}

</mosaic_0001>

<llo_original>
// kernel: tpu_custom_call.1
$region0: #{tpu_custom_call.1}
  #allocation0 [shape = 'u32[]', space=smem, size = 0x4, offset = 0x4, fixed_abs, tag = 'smem constant byte address 0x4 - core index']
  #allocation1 [shape = 'u32[144,128]{1,0:T(1,128)}', space=vmem, size = 0x12000, scoped, tag = 'internal scratch']
  #allocation2 [shape = 'f32[2,8,128]{2,1,0:T(8,128)}', space=vmem, size = 0x2000, scoped, tag = 'scratch operand']
  #allocation3 [shape = 's32[2]{0}', space=sflag, size = 0x8, scoped, tag = 'scratch operand']
  #allocation4 [shape = 's32[1]{0}', space=sflag, size = 0x4, scoped, tag = 'scoped memory for tpu_custom_call.1']
  #allocation5 [shape = 'u8[512]{0}', space=smem, size = 0x200, scoped, tag = 'prefetched SMEM operand 0']
  #allocation8 [shape = 's32[]', space=sflag, size = 0x4, offset = 0, fixed_abs, tag = 'sflag constant byte address 0x0 - dummy sync flag']
  #allocation9 [shape = 's32[]', space=sflag, size = 0x4, offset = 0, fixed_abs, tag = 'sflag constant byte address 0x0 - dummy sync flag']
  #allocation10 [shape = 'u32[]', space=smem, size = 0x4, offset = 0x44, fixed_abs, tag = 'smem constant byte address 0x44 - assertion arg 0']
  #allocation11 [shape = 'u32[]', space=smem, size = 0x4, offset = 0x48, fixed_abs, tag = 'smem constant byte address 0x48 - assertion arg 1']
  #allocation12 [shape = 's32[]', space=sflag, size = 0x4, offset = 0, fixed_abs, tag = 'sflag constant byte address 0x0 - dummy sync flag']
  #allocation13 [shape = 's32[]', space=sflag, size = 0x4, offset = 0, fixed_abs, tag = 'sflag constant byte address 0x0 - dummy sync flag']
  #allocation14 [shape = 's32[]', space=sflag, size = 0x4, offset = 0, fixed_abs, tag = 'sflag constant byte address 0x0 - dummy sync flag']
  #allocation15 [shape = 's32[]', space=sflag, size = 0x4, offset = 0, fixed_abs, tag = 'sflag constant byte address 0x0 - dummy sync flag']
  #allocation16 [shape = 's32[]', space=sflag, size = 0x4, offset = 0, fixed_abs, tag = 'sflag constant byte address 0x0 - dummy sync flag']
  #allocation17 [shape = 's32[]', space=sflag, size = 0x4, offset = 0, fixed_abs, tag = 'sflag constant byte address 0x0 - dummy sync flag']
  #allocation18 [shape = 's32[]', space=sflag, size = 0x4, offset = 0, fixed_abs, tag = 'sflag constant byte address 0x0 - dummy sync flag']
  #allocation19 [shape = 's32[]', space=sflag, size = 0x4, offset = 0, fixed_abs, tag = 'sflag constant byte address 0x0 - dummy sync flag']
  #allocation20 [shape = 's32[]', space=sflag, size = 0x4, offset = 0, fixed_abs, tag = 'sflag constant byte address 0x0 - dummy sync flag']
  #allocation21 [shape = 's32[]', space=sflag, size = 0x4, offset = 0, fixed_abs, tag = 'sflag constant byte address 0x0 - dummy sync flag']
  #allocation22 [shape = 's32[]', space=sflag, size = 0x4, offset = 0, fixed_abs, tag = 'sflag constant byte address 0x0 - dummy sync flag']
  #allocation23 [shape = 's32[]', space=sflag, size = 0x4, offset = 0, fixed_abs, tag = 'sflag constant byte address 0x0 - dummy sync flag']
  #allocation24 [shape = 's32[]', space=sflag, size = 0x4, offset = 0, fixed_abs, tag = 'sflag constant byte address 0x0 - dummy sync flag']
  #allocation25 [shape = 's32[]', space=sflag, size = 0x4, offset = 0, fixed_abs, tag = 'sflag constant byte address 0x0 - dummy sync flag']
  #allocation26 [shape = 's32[]', space=sflag, size = 0x4, offset = 0, fixed_abs, tag = 'sflag constant byte address 0x0 - dummy sync flag']
  #allocation27 [shape = 's32[]', space=sflag, size = 0x4, offset = 0, fixed_abs, tag = 'sflag constant byte address 0x0 - dummy sync flag']
  #allocation28 [shape = 's32[]', space=sflag, size = 0x4, offset = 0, fixed_abs, tag = 'sflag constant byte address 0x0 - dummy sync flag']
  #allocation29 [shape = 's32[]', space=sflag, size = 0x4, offset = 0, fixed_abs, tag = 'sflag constant byte address 0x0 - dummy sync flag']
  #allocation30 [shape = 's32[]', space=sflag, size = 0x4, offset = 0, fixed_abs, tag = 'sflag constant byte address 0x0 - dummy sync flag']
  #allocation31 [shape = 's32[]', space=sflag, size = 0x4, offset = 0, fixed_abs, tag = 'sflag constant byte address 0x0 - dummy sync flag']
  #allocation32 [shape = 's32[]', space=sflag, size = 0x4, offset = 0, fixed_abs, tag = 'sflag constant byte address 0x0 - dummy sync flag']
  #allocation33 [shape = 's32[]', space=sflag, size = 0x4, offset = 0, fixed_abs, tag = 'sflag constant byte address 0x0 - dummy sync flag']
  #allocation34 [shape = 's32[]', space=sflag, size = 0x4, offset = 0, fixed_abs, tag = 'sflag constant byte address 0x0 - dummy sync flag']
  #allocation35 [shape = 's32[]', space=sflag, size = 0x4, offset = 0, fixed_abs, tag = 'sflag constant byte address 0x0 - dummy sync flag']
  #allocation36 [shape = 's32[]', space=sflag, size = 0x4, offset = 0, fixed_abs, tag = 'sflag constant byte address 0x0 - dummy sync flag']
  #allocation37 [shape = 's32[]', space=sflag, size = 0x4, offset = 0, fixed_abs, tag = 'sflag constant byte address 0x0 - dummy sync flag']
  #allocation38 [shape = 's32[]', space=sflag, size = 0x4, offset = 0, fixed_abs, tag = 'sflag constant byte address 0x0 - dummy sync flag']
  #allocation39 [shape = 's32[]', space=sflag, size = 0x4, offset = 0, fixed_abs, tag = 'sflag constant byte address 0x0 - dummy sync flag']
  #allocation40 [shape = 's32[]', space=sflag, size = 0x4, offset = 0, fixed_abs, tag = 'sflag constant byte address 0x0 - dummy sync flag']
  #allocation41 [shape = 's32[]', space=sflag, size = 0x4, offset = 0, fixed_abs, tag = 'sflag constant byte address 0x0 - dummy sync flag']
  %s0 = inlined_call_operand.hbm [shape: s32[16], index: 0, kind: input, shape index: {}]
  %s1 = inlined_call_operand.hbm [shape: f32[32,128], index: 1, kind: input, shape index: {}]
  %s2 = inlined_call_operand.hbm [shape: f32[16,128], index: 2, kind: output, shape index: {}]
  %s3 = sld [smem:[#allocation0]]
  $region97: #{tpu_custom_call.1} parent=0
    _
  %s5 = ssub.s32 1, %s3
  %s6 = scalar_select 0, %s5, %s3
  %8 = dma.hbm_to_smem %s0, 16, [#allocation5], [#allocation4]
  %9 = dma.done [#allocation4], 16
  %10 = sfence
  $region1: #{tpu_custom_call.1} parent=0
    #allocation6 [shape = 'u8[8192]{0}', space=vmem, size = 0x2000, scoped, tag = 'output window, operand 0']
    #allocation7 [shape = 's32[2]{0}', space=sflag, size = 0x8, scoped, tag = 'scoped memory for tpu_custom_call.1']
    %11 = vsyncpa [#allocation7], 0
    %s12 = scalar_lea.sflag [#allocation7], 1
    %13 = vsyncpa %s12, 0
    loop: start=0, step=1, limit=3
    $region2: #{tpu_custom_call.1} parent=1 // loop_pre_header
      _
    $region3: #{tpu_custom_call.1} parent=1 // loop_header
      %s15 = sphi 0, %s19
      %p16 = scmp.ge.s32.totalorder %s15, 3
      %s24 = sphi 0, %s26
      %s27 = sphi 0, %s24
      %s37 = sphi 0, %s27
    $region4: #{tpu_custom_call.1} parent=1 // loop_header_branch
      %18 = sbr.rel (%p16) target = $region8
    $region5: #{tpu_custom_call.1} parent=1 // loop_body
      %s20 = ssub.s32 %s15, 1
      %s21 = sadd.s32 %s15, 1
      %s22 = ssub.s32 %s15, %s21
      %p23 = scmp.eq.s32.totalorder %s22, 0
      %s25 = sadd.s32 %s24, 1
      %s26 = scalar_select %p23, %s24, %s25
      %p28 = pneg %p23
      %p29 = scmp.eq.s32.totalorder %s15, 1
      %p30 = por %p28, %p29
      %p31 = scmp.ne.s32.totalorder %s24, %s27
      %p32 = scmp.eq.s32.totalorder %s15, 0
      %p33 = por %p31, %p32
      %p34 = scmp.ne.s32.totalorder %s24, %s27
      %p35 = scmp.eq.s32.totalorder %s20, 1
      %p36 = por %p34, %p35
      %p38 = scmp.ne.s32.totalorder %s27, %s37
      %p39 = scmp.eq.s32.totalorder %s20, 0
      %p40 = por %p38, %p39
      %p41 = scmp.lt.s32.totalorder %s15, 2
      // Predicated region
      $region9: #{tpu_custom_call.1} parent=5 // pred_check
        %p42 = pneg %p41
      $region10: #{tpu_custom_call.1} parent=5 // pred_check_branch
        %44 = sbr.rel (%p42) target = $region12
      $region11: #{tpu_custom_call.1} parent=5 // pred_region
        %p45 = pneg %p33
        %p46 = pneg %p30
        %s47 = sand.u32 %s24, 1
        %s48 = scalar_lea.sflag [#allocation7], %s47
        %s49 = sand.u32 %s24, 1
        %s50 = smul.addr %s49, 8
        %s51 = scalar_lea.vmem [#allocation6], %s50
        %p52 = scmp.eq.s32.totalorder %s15, 0
        // Predicated region
        $region13: #{tpu_custom_call.1} parent=11 // pred_check
          %p53 = pneg %p52
        $region14: #{tpu_custom_call.1} parent=11 // pred_check_branch
          %55 = sbr.rel (%p53) target = $region16
        $region15: #{tpu_custom_call.1} parent=11 // pred_region
          %s56 = sld [smem:[#allocation5]]
          %p57 = scmp.gt.s32.totalorder %s56, 0
          %s58 = scalar_select %p57, %s56, 0
          %p59 = scmp.lt.s32.totalorder %s58, 31
          %s60 = scalar_select %p59, %s58, 31
          %s61 = smul.addr %s60, 16
          %s62 = scalar_lea.hbm %s1, %s61
          // Predicated region
          $region17: #{tpu_custom_call.1} parent=15 // pred_check
            _
          $region18: #{tpu_custom_call.1} parent=15 // pred_check_branch
            %64 = sbr.rel target = $region20
          $region19: #{tpu_custom_call.1} parent=15 // pred_region
            %65 = sst [smem:[#allocation10]] [#allocation9]
            %66 = sst [smem:[#allocation11]] [#allocation8]
          $region20: #{tpu_custom_call.1} parent=15 // pred_fallthru
            _
          %68 = shalt.err (0)
          %s70 = sshll.u32 [#allocation2], 4
          %s71 = int_to_ptr.vmem [resolvable:$true] %s70
          %73 = dma.hbm_to_vmem [thread:$0]  %s62, 16, %s71, [#allocation3]
          %s74 = sld [smem:[#allocation5 + $0x1]]
          %p75 = scmp.gt.s32.totalorder %s74, 0
          %s76 = scalar_select %p75, %s74, 0
          %p77 = scmp.lt.s32.totalorder %s76, 31
          %s78 = scalar_select %p77, %s76, 31
          %s79 = smul.addr %s78, 16
          %s80 = scalar_lea.hbm %s1, %s79
          %s81 = scalar_lea.vmem [#allocation2], 1
          // Predicated region
          $region21: #{tpu_custom_call.1} parent=15 // pred_check
            _
          $region22: #{tpu_custom_call.1} parent=15 // pred_check_branch
            %83 = sbr.rel target = $region24
          $region23: #{tpu_custom_call.1} parent=15 // pred_region
            %84 = sst [smem:[#allocation10]] [#allocation13]
            %85 = sst [smem:[#allocation11]] [#allocation12]
          $region24: #{tpu_custom_call.1} parent=15 // pred_fallthru
            _
          %87 = shalt.err (0)
          %s89 = sshll.u32 %s81, 4
          %s90 = int_to_ptr.vmem [resolvable:$true] %s89
          %92 = dma.hbm_to_vmem [thread:$0]  %s80, 16, %s90, [#allocation3]
          %s93 = sld [smem:[#allocation5 + $0x2]]
          %p94 = scmp.gt.s32.totalorder %s93, 0
          %s95 = scalar_select %p94, %s93, 0
          %p96 = scmp.lt.s32.totalorder %s95, 31
          %s97 = scalar_select %p96, %s95, 31
          %s98 = smul.addr %s97, 16
          %s99 = scalar_lea.hbm %s1, %s98
          %s100 = scalar_lea.vmem [#allocation2], 2
          // Predicated region
          $region25: #{tpu_custom_call.1} parent=15 // pred_check
            _
          $region26: #{tpu_custom_call.1} parent=15 // pred_check_branch
            %102 = sbr.rel target = $region28
          $region27: #{tpu_custom_call.1} parent=15 // pred_region
            %103 = sst [smem:[#allocation10]] [#allocation15]
            %104 = sst [smem:[#allocation11]] [#allocation14]
          $region28: #{tpu_custom_call.1} parent=15 // pred_fallthru
            _
          %106 = shalt.err (0)
          %s108 = sshll.u32 %s100, 4
          %s109 = int_to_ptr.vmem [resolvable:$true] %s108
          %111 = dma.hbm_to_vmem [thread:$0]  %s99, 16, %s109, [#allocation3]
          %s112 = sld [smem:[#allocation5 + $0x3]]
          %p113 = scmp.gt.s32.totalorder %s112, 0
          %s114 = scalar_select %p113, %s112, 0
          %p115 = scmp.lt.s32.totalorder %s114, 31
          %s116 = scalar_select %p115, %s114, 31
          %s117 = smul.addr %s116, 16
          %s118 = scalar_lea.hbm %s1, %s117
          %s119 = scalar_lea.vmem [#allocation2], 3
          // Predicated region
          $region29: #{tpu_custom_call.1} parent=15 // pred_check
            _
          $region30: #{tpu_custom_call.1} parent=15 // pred_check_branch
            %121 = sbr.rel target = $region32
          $region31: #{tpu_custom_call.1} parent=15 // pred_region
            %122 = sst [smem:[#allocation10]] [#allocation17]
            %123 = sst [smem:[#allocation11]] [#allocation16]
          $region32: #{tpu_custom_call.1} parent=15 // pred_fallthru
            _
          %125 = shalt.err (0)
          %s127 = sshll.u32 %s119, 4
          %s128 = int_to_ptr.vmem [resolvable:$true] %s127
          %130 = dma.hbm_to_vmem [thread:$0]  %s118, 16, %s128, [#allocation3]
          %s131 = sld [smem:[#allocation5 + $0x4]]
          %p132 = scmp.gt.s32.totalorder %s131, 0
          %s133 = scalar_select %p132, %s131, 0
          %p134 = scmp.lt.s32.totalorder %s133, 31
          %s135 = scalar_select %p134, %s133, 31
          %s136 = smul.addr %s135, 16
          %s137 = scalar_lea.hbm %s1, %s136
          %s138 = scalar_lea.vmem [#allocation2], 4
          // Predicated region
          $region33: #{tpu_custom_call.1} parent=15 // pred_check
            _
          $region34: #{tpu_custom_call.1} parent=15 // pred_check_branch
            %140 = sbr.rel target = $region36
          $region35: #{tpu_custom_call.1} parent=15 // pred_region
            %141 = sst [smem:[#allocation10]] [#allocation19]
            %142 = sst [smem:[#allocation11]] [#allocation18]
          $region36: #{tpu_custom_call.1} parent=15 // pred_fallthru
            _
          %144 = shalt.err (0)
          %s146 = sshll.u32 %s138, 4
          %s147 = int_to_ptr.vmem [resolvable:$true] %s146
          %149 = dma.hbm_to_vmem [thread:$0]  %s137, 16, %s147, [#allocation3]
          %s150 = sld [smem:[#allocation5 + $0x5]]
          %p151 = scmp.gt.s32.totalorder %s150, 0
          %s152 = scalar_select %p151, %s150, 0
          %p153 = scmp.lt.s32.totalorder %s152, 31
          %s154 = scalar_select %p153, %s152, 31
          %s155 = smul.addr %s154, 16
          %s156 = scalar_lea.hbm %s1, %s155
          %s157 = scalar_lea.vmem [#allocation2], 5
          // Predicated region
          $region37: #{tpu_custom_call.1} parent=15 // pred_check
            _
          $region38: #{tpu_custom_call.1} parent=15 // pred_check_branch
            %159 = sbr.rel target = $region40
          $region39: #{tpu_custom_call.1} parent=15 // pred_region
            %160 = sst [smem:[#allocation10]] [#allocation21]
            %161 = sst [smem:[#allocation11]] [#allocation20]
          $region40: #{tpu_custom_call.1} parent=15 // pred_fallthru
            _
          %163 = shalt.err (0)
          %s165 = sshll.u32 %s157, 4
          %s166 = int_to_ptr.vmem [resolvable:$true] %s165
          %168 = dma.hbm_to_vmem [thread:$0]  %s156, 16, %s166, [#allocation3]
          %s169 = sld [smem:[#allocation5 + $0x6]]
          %p170 = scmp.gt.s32.totalorder %s169, 0
          %s171 = scalar_select %p170, %s169, 0
          %p172 = scmp.lt.s32.totalorder %s171, 31
          %s173 = scalar_select %p172, %s171, 31
          %s174 = smul.addr %s173, 16
          %s175 = scalar_lea.hbm %s1, %s174
          %s176 = scalar_lea.vmem [#allocation2], 6
          // Predicated region
          $region41: #{tpu_custom_call.1} parent=15 // pred_check
            _
          $region42: #{tpu_custom_call.1} parent=15 // pred_check_branch
            %178 = sbr.rel target = $region44
          $region43: #{tpu_custom_call.1} parent=15 // pred_region
            %179 = sst [smem:[#allocation10]] [#allocation23]
            %180 = sst [smem:[#allocation11]] [#allocation22]
          $region44: #{tpu_custom_call.1} parent=15 // pred_fallthru
            _
          %182 = shalt.err (0)
          %s184 = sshll.u32 %s176, 4
          %s185 = int_to_ptr.vmem [resolvable:$true] %s184
          %187 = dma.hbm_to_vmem [thread:$0]  %s175, 16, %s185, [#allocation3]
          %s188 = sld [smem:[#allocation5 + $0x7]]
          %p189 = scmp.gt.s32.totalorder %s188, 0
          %s190 = scalar_select %p189, %s188, 0
          %p191 = scmp.lt.s32.totalorder %s190, 31
          %s192 = scalar_select %p191, %s190, 31
          %s193 = smul.addr %s192, 16
          %s194 = scalar_lea.hbm %s1, %s193
          %s195 = scalar_lea.vmem [#allocation2], 7
          // Predicated region
          $region45: #{tpu_custom_call.1} parent=15 // pred_check
            _
          $region46: #{tpu_custom_call.1} parent=15 // pred_check_branch
            %197 = sbr.rel target = $region48
          $region47: #{tpu_custom_call.1} parent=15 // pred_region
            %198 = sst [smem:[#allocation10]] [#allocation25]
            %199 = sst [smem:[#allocation11]] [#allocation24]
          $region48: #{tpu_custom_call.1} parent=15 // pred_fallthru
            _
          %201 = shalt.err (0)
          %s203 = sshll.u32 %s195, 4
          %s204 = int_to_ptr.vmem [resolvable:$true] %s203
          %206 = dma.hbm_to_vmem [thread:$0]  %s194, 16, %s204, [#allocation3]
        $region16: #{tpu_custom_call.1} parent=11 // pred_fallthru
          _
        %s207 = sadd.s32 %s15, 1
        %p208 = scmp.lt.s32.totalorder %s207, 2
        // Predicated region
        $region49: #{tpu_custom_call.1} parent=11 // pred_check
          %p209 = pneg %p208
        $region50: #{tpu_custom_call.1} parent=11 // pred_check_branch
          %211 = sbr.rel (%p209) target = $region52
        $region51: #{tpu_custom_call.1} parent=11 // pred_region
          %p212 = scmp.lt.s32.totalorder %s207, 0
          %s213 = ssub.s32 0, %s207
          %s214 = scalar_select %p212, %s213, %s207
          %s215 = sand.u32 %s214, 1
          %s216 = ssub.s32 0, %s215
          %s217 = scalar_select %p212, %s216, %s215
          %p218 = scmp.ne.s32.totalorder %s217, 0
          %p219 = scmp.lt.s32.totalorder %s217, 0
          %p220 = pnand %p219, %p218
          %p221 = pneg %p220
          %s222 = sadd.s32 %s217, 2
          %s223 = scalar_select %p221, %s222, %s217
          %s224 = smul.u32 %s207, 8
          %s225 = sld [smem:[#allocation5 + %s224]]
          %p226 = scmp.gt.s32.totalorder %s225, 0
          %s227 = scalar_select %p226, %s225, 0
          %p228 = scmp.lt.s32.totalorder %s227, 31
          %s229 = scalar_select %p228, %s227, 31
          %s230 = smul.addr %s229, 16
          %s231 = scalar_lea.hbm %s1, %s230
          %s232 = smul.u32 %s223, 8
          %s233 = scalar_lea.vmem [#allocation2], %s232
          %s234 = scalar_lea.sflag [#allocation3], %s223
          // Predicated region
          $region53: #{tpu_custom_call.1} parent=51 // pred_check
            _
          $region54: #{tpu_custom_call.1} parent=51 // pred_check_branch
            %236 = sbr.rel target = $region56
          $region55: #{tpu_custom_call.1} parent=51 // pred_region
            %237 = sst [smem:[#allocation10]] [#allocation27]
            %238 = sst [smem:[#allocation11]] [#allocation26]
          $region56: #{tpu_custom_call.1} parent=51 // pred_fallthru
            _
          %240 = shalt.err (0)
          %s242 = sshll.u32 %s233, 4
          %s243 = int_to_ptr.vmem [resolvable:$true] %s242
          %245 = dma.hbm_to_vmem [thread:$0]  %s231, 16, %s243, %s234
          %s246 = sadd.s32 %s224, 1
          %s247 = sld [smem:[#allocation5 + %s246]]
          %p248 = scmp.gt.s32.totalorder %s247, 0
          %s249 = scalar_select %p248, %s247, 0
          %p250 = scmp.lt.s32.totalorder %s249, 31
          %s251 = scalar_select %p250, %s249, 31
          %s252 = smul.addr %s251, 16
          %s253 = scalar_lea.hbm %s1, %s252
          %s254 = sadd.s32 1, %s232
          %s255 = scalar_lea.vmem [#allocation2], %s254
          // Predicated region
          $region57: #{tpu_custom_call.1} parent=51 // pred_check
            _
          $region58: #{tpu_custom_call.1} parent=51 // pred_check_branch
            %257 = sbr.rel target = $region60
          $region59: #{tpu_custom_call.1} parent=51 // pred_region
            %258 = sst [smem:[#allocation10]] [#allocation29]
            %259 = sst [smem:[#allocation11]] [#allocation28]
          $region60: #{tpu_custom_call.1} parent=51 // pred_fallthru
            _
          %261 = shalt.err (0)
          %s263 = sshll.u32 %s255, 4
          %s264 = int_to_ptr.vmem [resolvable:$true] %s263
          %266 = dma.hbm_to_vmem [thread:$0]  %s253, 16, %s264, %s234
          %s267 = sadd.s32 %s224, 2
          %s268 = sld [smem:[#allocation5 + %s267]]
          %p269 = scmp.gt.s32.totalorder %s268, 0
          %s270 = scalar_select %p269, %s268, 0
          %p271 = scmp.lt.s32.totalorder %s270, 31
          %s272 = scalar_select %p271, %s270, 31
          %s273 = smul.addr %s272, 16
          %s274 = scalar_lea.hbm %s1, %s273
          %s275 = sadd.s32 2, %s232
          %s276 = scalar_lea.vmem [#allocation2], %s275
          // Predicated region
          $region61: #{tpu_custom_call.1} parent=51 // pred_check
            _
          $region62: #{tpu_custom_call.1} parent=51 // pred_check_branch
            %278 = sbr.rel target = $region64
          $region63: #{tpu_custom_call.1} parent=51 // pred_region
            %279 = sst [smem:[#allocation10]] [#allocation31]
            %280 = sst [smem:[#allocation11]] [#allocation30]
          $region64: #{tpu_custom_call.1} parent=51 // pred_fallthru
            _
          %282 = shalt.err (0)
          %s284 = sshll.u32 %s276, 4
          %s285 = int_to_ptr.vmem [resolvable:$true] %s284
          %287 = dma.hbm_to_vmem [thread:$0]  %s274, 16, %s285, %s234
          %s288 = sadd.s32 %s224, 3
          %s289 = sld [smem:[#allocation5 + %s288]]
          %p290 = scmp.gt.s32.totalorder %s289, 0
          %s291 = scalar_select %p290, %s289, 0
          %p292 = scmp.lt.s32.totalorder %s291, 31
          %s293 = scalar_select %p292, %s291, 31
          %s294 = smul.addr %s293, 16
          %s295 = scalar_lea.hbm %s1, %s294
          %s296 = sadd.s32 3, %s232
          %s297 = scalar_lea.vmem [#allocation2], %s296
          // Predicated region
          $region65: #{tpu_custom_call.1} parent=51 // pred_check
            _
          $region66: #{tpu_custom_call.1} parent=51 // pred_check_branch
            %299 = sbr.rel target = $region68
          $region67: #{tpu_custom_call.1} parent=51 // pred_region
            %300 = sst [smem:[#allocation10]] [#allocation33]
            %301 = sst [smem:[#allocation11]] [#allocation32]
          $region68: #{tpu_custom_call.1} parent=51 // pred_fallthru
            _
          %303 = shalt.err (0)
          %s305 = sshll.u32 %s297, 4
          %s306 = int_to_ptr.vmem [resolvable:$true] %s305
          %308 = dma.hbm_to_vmem [thread:$0]  %s295, 16, %s306, %s234
          %s309 = sadd.s32 %s224, 4
          %s310 = sld [smem:[#allocation5 + %s309]]
          %p311 = scmp.gt.s32.totalorder %s310, 0
          %s312 = scalar_select %p311, %s310, 0
          %p313 = scmp.lt.s32.totalorder %s312, 31
          %s314 = scalar_select %p313, %s312, 31
          %s315 = smul.addr %s314, 16
          %s316 = scalar_lea.hbm %s1, %s315
          %s317 = sadd.s32 4, %s232
          %s318 = scalar_lea.vmem [#allocation2], %s317
          // Predicated region
          $region69: #{tpu_custom_call.1} parent=51 // pred_check
            _
          $region70: #{tpu_custom_call.1} parent=51 // pred_check_branch
            %320 = sbr.rel target = $region72
          $region71: #{tpu_custom_call.1} parent=51 // pred_region
            %321 = sst [smem:[#allocation10]] [#allocation35]
            %322 = sst [smem:[#allocation11]] [#allocation34]
          $region72: #{tpu_custom_call.1} parent=51 // pred_fallthru
            _
          %324 = shalt.err (0)
          %s326 = sshll.u32 %s318, 4
          %s327 = int_to_ptr.vmem [resolvable:$true] %s326
          %329 = dma.hbm_to_vmem [thread:$0]  %s316, 16, %s327, %s234
          %s330 = sadd.s32 %s224, 5
          %s331 = sld [smem:[#allocation5 + %s330]]
          %p332 = scmp.gt.s32.totalorder %s331, 0
          %s333 = scalar_select %p332, %s331, 0
          %p334 = scmp.lt.s32.totalorder %s333, 31
          %s335 = scalar_select %p334, %s333, 31
          %s336 = smul.addr %s335, 16
          %s337 = scalar_lea.hbm %s1, %s336
          %s338 = sadd.s32 5, %s232
          %s339 = scalar_lea.vmem [#allocation2], %s338
          // Predicated region
          $region73: #{tpu_custom_call.1} parent=51 // pred_check
            _
          $region74: #{tpu_custom_call.1} parent=51 // pred_check_branch
            %341 = sbr.rel target = $region76
          $region75: #{tpu_custom_call.1} parent=51 // pred_region
            %342 = sst [smem:[#allocation10]] [#allocation37]
            %343 = sst [smem:[#allocation11]] [#allocation36]
          $region76: #{tpu_custom_call.1} parent=51 // pred_fallthru
            _
          %345 = shalt.err (0)
          %s347 = sshll.u32 %s339, 4
          %s348 = int_to_ptr.vmem [resolvable:$true] %s347
          %350 = dma.hbm_to_vmem [thread:$0]  %s337, 16, %s348, %s234
          %s351 = sadd.s32 %s224, 6
          %s352 = sld [smem:[#allocation5 + %s351]]
          %p353 = scmp.gt.s32.totalorder %s352, 0
          %s354 = scalar_select %p353, %s352, 0
          %p355 = scmp.lt.s32.totalorder %s354, 31
          %s356 = scalar_select %p355, %s354, 31
          %s357 = smul.addr %s356, 16
          %s358 = scalar_lea.hbm %s1, %s357
          %s359 = sadd.s32 6, %s232
          %s360 = scalar_lea.vmem [#allocation2], %s359
          // Predicated region
          $region77: #{tpu_custom_call.1} parent=51 // pred_check
            _
          $region78: #{tpu_custom_call.1} parent=51 // pred_check_branch
            %362 = sbr.rel target = $region80
          $region79: #{tpu_custom_call.1} parent=51 // pred_region
            %363 = sst [smem:[#allocation10]] [#allocation39]
            %364 = sst [smem:[#allocation11]] [#allocation38]
          $region80: #{tpu_custom_call.1} parent=51 // pred_fallthru
            _
          %366 = shalt.err (0)
          %s368 = sshll.u32 %s360, 4
          %s369 = int_to_ptr.vmem [resolvable:$true] %s368
          %371 = dma.hbm_to_vmem [thread:$0]  %s358, 16, %s369, %s234
          %s372 = sadd.s32 %s224, 7
          %s373 = sld [smem:[#allocation5 + %s372]]
          %p374 = scmp.gt.s32.totalorder %s373, 0
          %s375 = scalar_select %p374, %s373, 0
          %p376 = scmp.lt.s32.totalorder %s375, 31
          %s377 = scalar_select %p376, %s375, 31
          %s378 = smul.addr %s377, 16
          %s379 = scalar_lea.hbm %s1, %s378
          %s380 = sadd.s32 7, %s232
          %s381 = scalar_lea.vmem [#allocation2], %s380
          // Predicated region
          $region81: #{tpu_custom_call.1} parent=51 // pred_check
            _
          $region82: #{tpu_custom_call.1} parent=51 // pred_check_branch
            %383 = sbr.rel target = $region84
          $region83: #{tpu_custom_call.1} parent=51 // pred_region
            %384 = sst [smem:[#allocation10]] [#allocation41]
            %385 = sst [smem:[#allocation11]] [#allocation40]
          $region84: #{tpu_custom_call.1} parent=51 // pred_fallthru
            _
          %387 = shalt.err (0)
          %s389 = sshll.u32 %s381, 4
          %s390 = int_to_ptr.vmem [resolvable:$true] %s389
          %392 = dma.hbm_to_vmem [thread:$0]  %s379, 16, %s390, %s234
        $region52: #{tpu_custom_call.1} parent=11 // pred_fallthru
          _
        %p393 = scmp.lt.s32.totalorder %s15, 0
        %s394 = ssub.s32 0, %s15
        %s395 = scalar_select %p393, %s394, %s15
        %s396 = sand.u32 %s395, 1
        %s397 = ssub.s32 0, %s396
        %s398 = scalar_select %p393, %s397, %s396
        %p399 = scmp.ne.s32.totalorder %s398, 0
        %p400 = scmp.lt.s32.totalorder %s398, 0
        %p401 = pnand %p400, %p399
        %p402 = pneg %p401
        %s403 = sadd.s32 %s398, 2
        %s404 = scalar_select %p402, %s403, %s398
        %s405 = scalar_lea.sflag [#allocation3], %s404
        %s406 = smul.u32 1, 1
        %s407 = sshll.u32 %s406, 4
        %408 = dma.done %s405, %s407
        %s409 = sshll.u32 %s406, 4
        %410 = dma.done %s405, %s409
        %s411 = sshll.u32 %s406, 4
        %412 = dma.done %s405, %s411
        %s413 = sshll.u32 %s406, 4
        %414 = dma.done %s405, %s413
        %s415 = sshll.u32 %s406, 4
        %416 = dma.done %s405, %s415
        %s417 = sshll.u32 %s406, 4
        %418 = dma.done %s405, %s417
        %s419 = sshll.u32 %s406, 4
        %420 = dma.done %s405, %s419
        %s421 = sshll.u32 %s406, 4
        %422 = dma.done %s405, %s421
        %s423 = smul.u32 %s404, 8
        %s424 = scalar_lea.vmem [#allocation2], %s423
        %v425 = vld [vmem:[%s424] sm:$0xff]
        %v426 = vmul.f32 %v425, 11.313708
        %427 = vst [vmem:[%s51] sm:$0xff] %v426
        %s428 = sand.u32 %s24, 1
        %s429 = scalar_lea.sflag [#allocation7], %s428
        %s430 = sand.u32 %s24, 1
        %s431 = smul.addr %s430, 8
        %s432 = scalar_lea.vmem [#allocation6], %s431
        // Predicated region
        $region85: #{tpu_custom_call.1} parent=11 // pred_check
          %p433 = pneg %p30
        $region86: #{tpu_custom_call.1} parent=11 // pred_check_branch
          %435 = sbr.rel (%p433) target = $region88
        $region87: #{tpu_custom_call.1} parent=11 // pred_region
          %s437 = ssub.s32 128, 128
          %438 = vsyncadd %s429, %s437
          %s439 = smul.addr %s15, 128
          %s440 = scalar_lea.hbm %s2, %s439
          %s442 = sshll.u32 %s432, 4
          %s443 = int_to_ptr.vmem [resolvable:$true] %s442
          %445 = dma.vmem_to_hbm [thread:$0]  %s443, 128, %s440, %s429
        $region88: #{tpu_custom_call.1} parent=11 // pred_fallthru
          _
      $region12: #{tpu_custom_call.1} parent=5 // pred_fallthru
        _
      %p446 = scmp.le.s32.totalorder 1, %s15
      // Predicated region
      $region89: #{tpu_custom_call.1} parent=5 // pred_check
        %p447 = pneg %p446
      $region90: #{tpu_custom_call.1} parent=5 // pred_check_branch
        %449 = sbr.rel (%p447) target = $region92
      $region91: #{tpu_custom_call.1} parent=5 // pred_region
        %s450 = ssub.s32 %s15, 1
        // Predicated region
        $region93: #{tpu_custom_call.1} parent=91 // pred_check
          %p451 = pneg %p36
        $region94: #{tpu_custom_call.1} parent=91 // pred_check_branch
          %453 = sbr.rel (%p451) target = $region96
        $region95: #{tpu_custom_call.1} parent=91 // pred_region
          %s454 = sand.u32 %s27, 1
          %s455 = scalar_lea.sflag [#allocation7], %s454
          %s456 = sand.u32 %s27, 1
          %s457 = smul.addr %s456, 8
          %s458 = scalar_lea.vmem [#allocation6], %s457
          %459 = dma.done %s455, 128
        $region96: #{tpu_custom_call.1} parent=91 // pred_fallthru
          _
      $region92: #{tpu_custom_call.1} parent=5 // pred_fallthru
        _
    $region6: #{tpu_custom_call.1} parent=1 // loop_footer
      %s19 = sadd.s32 1, %s15
    $region7: #{tpu_custom_call.1} parent=1 // loop_footer_branch
      %14 = sbr.rel target = $region3
    $region8: #{tpu_custom_call.1} parent=1 // loop_exit
      _
    %460 = vsyncpa [#allocation7], 1
    %s461 = scalar_lea.sflag [#allocation7], 1
    %462 = vsyncpa %s461, 1
  %463 = vsyncmov [#allocation3]
  %s464 = vpop.sfrf %463
  %p465 = scmp.eq.s32.totalorder %s464, 0
  %p466 = pneg %p465
  %468 = shalt.err (%p466)
  %s469 = scalar_lea.sflag [#allocation3], 1
  %470 = vsyncmov %s469
  %s471 = vpop.sfrf %470
  %p472 = scmp.eq.s32.totalorder %s471, 0
  %p473 = pneg %p472
  %475 = shalt.err (%p473)

</llo_original>
